<compile_context>
chip_gen: v7x
topology: tpu7x:2x2x1
jax: 0.10.0
libtpu: 0.0.40
codegen_flags: <defaults>
</compile_context>

<pallas_src>
import jax
import jax.numpy as jnp
from jax.experimental import pallas as pl
from jax.experimental.pallas import tpu as pltpu

LANE = 128            # feature dims padded to multiples of the lane width
SUBLANE = 16          # batch tile kept a multiple of 16 (bf16 sublane packing)
W2_SLAB_BYTES = 8 * 1024 * 1024   # per-buffer budget for a streamed w2 slab

# Flipped to False (once) if this JAX build rejects pl.Buffered(1).
_RESIDENT_SINGLE_BUFFER = True


def _round_up(x, m):
    return (x + m - 1) // m * m


def _cdiv(a, b):
    return -(-a // b)


def _pad2(a, rows, cols, dtype):
    a = jnp.asarray(a, dtype)
    pr, pc = rows - a.shape[0], cols - a.shape[1]
    if pr or pc:
        a = jnp.pad(a, ((0, pr), (0, pc)))
    return a


def _block_spec(shape, index_map, mode=None):
    if mode is None:
        return pl.BlockSpec(shape, index_map)
    return pl.BlockSpec(shape, index_map, pipeline_mode=mode)


def _choose_batch_tiling(B, tile_b_max):
    """Pick (tile_b, n_tiles) minimizing tail padding, with >=2 grid steps
    (v7x megacore) whenever the batch is big enough."""
    b16 = _round_up(max(B, 1), SUBLANE)
    tile_b_max = max(SUBLANE, _round_up(min(tile_b_max, b16), SUBLANE))
    n_tiles = _cdiv(b16, tile_b_max)
    if n_tiles < 2 and b16 >= 2 * SUBLANE:
        n_tiles = 2
    tile_b = _round_up(_cdiv(b16, n_tiles), SUBLANE)
    n_tiles = _cdiv(b16, tile_b)
    return tile_b, n_tiles


def _choose_n_tiling(Hp):
    """Pick w2 output-column slab width tn (multiple of 128 dividing Hp)."""
    blocks = Hp // LANE
    w2_bytes = Hp * Hp * 2                      # bf16
    if w2_bytes <= W2_SLAB_BYTES:
        return Hp, 1
    want = _cdiv(w2_bytes, W2_SLAB_BYTES)
    for d in range(want, blocks + 1):
        if blocks % d == 0:
            return Hp // d, d
    return LANE, blocks


def encoder_kernel(x_ref, w1_ref, b1_ref, w2_ref, b2_ref, o_ref, h_ref):
    # Layer 1 only once per batch tile (reused across w2 column slabs).
    @pl.when(pl.program_id(1) == 0)
    def _():
        h = jnp.dot(x_ref[...], w1_ref[...], preferred_element_type=jnp.float32)
        h_ref[...] = jnp.maximum(h + b1_ref[...], 0.0).astype(h_ref.dtype)

    # Layer 2 on the current w2 column slab.
    y = jnp.dot(h_ref[...], w2_ref[...], preferred_element_type=jnp.float32)
    o_ref[...] = jnp.maximum(y + b2_ref[...], 0.0).astype(o_ref.dtype)


def prepare_encoder_params(w1, b1, w2, b2):
    """Pad feature dims to lane multiples and cast to bf16 ONCE per model.

    w1: (input_dim, hidden_dim), w2: (hidden_dim, hidden_dim) are stored as
    (in_features, out_features), i.e. the transpose of nn.Linear.weight.
    b1, b2: (hidden_dim,) or (1, hidden_dim).
    """
    D, H = w1.shape
    Dp, Hp = _round_up(D, LANE), _round_up(H, LANE)
    b1 = jnp.asarray(b1).reshape(1, -1)
    b2 = jnp.asarray(b2).reshape(1, -1)
    return {
        "w1": _pad2(w1, Dp, Hp, jnp.bfloat16),
        "b1": _pad2(b1, 1, Hp, jnp.float32),
        "w2": _pad2(w2, Hp, Hp, jnp.bfloat16),
        "b2": _pad2(b2, 1, Hp, jnp.float32),
        "input_dim": D,
        "hidden_dim": H,
    }


def encoder_forward(x, params, *, tile_b=512, out_dtype=None):
    """x: (B, input_dim). params: from prepare_encoder_params."""
    global _RESIDENT_SINGLE_BUFFER

    w1p, b1p, w2p, b2p = params["w1"], params["b1"], params["w2"], params["b2"]
    D, H = params["input_dim"], params["hidden_dim"]
    Dp, Hp = w1p.shape
    B = x.shape[0]
    out_dtype = jnp.dtype(x.dtype if out_dtype is None else out_dtype)

    tb, n_btiles = _choose_batch_tiling(B, tile_b)
    Bp = tb * n_btiles
    tn, n_ntiles = _choose_n_tiling(Hp)

    # Conditional input padding (zero rows/cols are mathematically inert:
    # padded x cols meet zero w1 rows; padded hidden lanes are ReLU(0)=0
    # against zero w2 rows; padded output lanes/rows are sliced off below).
    xp = x.astype(jnp.bfloat16)
    if Bp != B or Dp != D:
        xp = jnp.pad(xp, ((0, Bp - B), (0, Dp - D)))

    flops = 2 * Bp * Hp * (Dp + Hp)
    bytes_accessed = (Bp * Dp * 2 + Dp * Hp * 2 + Hp * Hp * 2 + 8 * Hp
                      + Bp * Hp * out_dtype.itemsize)

    def run(resident_mode):
        w2_mode = resident_mode if n_ntiles == 1 else None
        w_bufs = 1 if resident_mode is not None else 2
        w2_bufs = 1 if w2_mode is not None else 2
        vmem_need = (w_bufs * (Dp * Hp * 2 + Hp * 4)        # w1 + b1
                     + w2_bufs * Hp * tn * 2                # w2 slab(s)
                     + 2 * tn * 4                           # b2
                     + 2 * tb * Dp * 2                      # x tiles (dbl-buf)
                     + 2 * tb * tn * out_dtype.itemsize     # out tiles
                     + tb * Hp * 2)                         # h scratch
        vmem_limit = min(max(vmem_need * 3 // 2 + (2 << 20), 16 << 20), 64 << 20)

        return pl.pallas_call(
            encoder_kernel,
            out_shape=jax.ShapeDtypeStruct((Bp, Hp), out_dtype),
            grid_spec=pltpu.PrefetchScalarGridSpec(
                num_scalar_prefetch=0,
                grid=(n_btiles, n_ntiles),
                in_specs=[
                    _block_spec((tb, Dp), lambda i, j: (i, 0)),                 # x: batch-tiled
                    _block_spec((Dp, Hp), lambda i, j: (0, 0), resident_mode),  # w1: resident
                    _block_spec((1, Hp), lambda i, j: (0, 0), resident_mode),   # b1: resident
                    _block_spec((Hp, tn), lambda i, j: (0, j), w2_mode),        # w2: streamed/resident
                    _block_spec((1, tn), lambda i, j: (0, j)),                  # b2
                ],
                out_specs=pl.BlockSpec((tb, tn), lambda i, j: (i, j)),
                scratch_shapes=[pltpu.VMEM((tb, Hp), jnp.bfloat16)],            # hidden act
            ),
            compiler_params=pltpu.CompilerParams(
                dimension_semantics=("parallel", "arbitrary"),
                vmem_limit_bytes=int(vmem_limit)),
            cost_estimate=pl.CostEstimate(
                flops=int(flops), transcendentals=0,
                bytes_accessed=int(bytes_accessed)),
        )(xp, w1p, b1p, w2p, b2p)

    if _RESIDENT_SINGLE_BUFFER:
        try:
            out = run(pl.Buffered(1))
        except Exception:
            _RESIDENT_SINGLE_BUFFER = False
            out = run(None)
    else:
        out = run(None)

    if Bp != B or Hp != H:
        out = out[:B, :H]
    return out


def init_encoder_params(key, input_dim, hidden_dim, dtype=jnp.float32):
    """Deterministic init mimicking nn.Linear's U(-1/sqrt(fan_in), 1/sqrt(fan_in))."""
    k1, k2, k3, k4 = jax.random.split(key, 4)
    lim1 = 1.0 / jnp.sqrt(input_dim)
    lim2 = 1.0 / jnp.sqrt(hidden_dim)
    # Weights stored as (in, out) == PyTorch weight.T
    w1 = jax.random.uniform(k1, (input_dim, hidden_dim), dtype, -lim1, lim1)
    b1 = jax.random.uniform(k2, (1, hidden_dim), dtype, -lim1, lim1)
    w2 = jax.random.uniform(k3, (hidden_dim, hidden_dim), dtype, -lim2, lim2)
    b2 = jax.random.uniform(k4, (1, hidden_dim), dtype, -lim2, lim2)
    return w1, b1, w2, b2


def _reference(x, w1, b1, w2, b2):
    return jnp.maximum(jnp.maximum(x @ w1 + b1, 0.0) @ w2 + b2, 0.0)


if __name__ == "__main__":
    key = jax.random.PRNGKey(0)

    # Case 1: small shapes consistent with the module (needs lane padding).
    batch, input_dim, hidden_dim = 8, 16, 32
    kx, kp, key = jax.random.split(key, 3)
    x = jax.random.normal(kx, (batch, input_dim), jnp.float32)
    w1, b1, w2, b2 = init_encoder_params(kp, input_dim, hidden_dim)
    params = prepare_encoder_params(w1, b1, w2, b2)
    out = jax.block_until_ready(encoder_forward(x, params))
    ref = _reference(x, w1, b1, w2, b2)
    assert out.shape == (batch, hidden_dim)
    assert jnp.allclose(out, ref, atol=5e-2, rtol=5e-2), \
        float(jnp.max(jnp.abs(out - ref)))

    # Case 2: lane-aligned features + >=2 batch tiles (exercises the grid /
    # scratch-reuse path without any feature padding).
    batch2, input_dim2, hidden_dim2 = 48, 128, 256
    kx2, kp2, key = jax.random.split(key, 3)
    x2 = jax.random.normal(kx2, (batch2, input_dim2), jnp.float32)
    w1b, b1b, w2b, b2b = init_encoder_params(kp2, input_dim2, hidden_dim2)
    params2 = prepare_encoder_params(w1b, b1b, w2b, b2b)
    out2 = jax.block_until_ready(encoder_forward(x2, params2))
    ref2 = _reference(x2, w1b, b1b, w2b, b2b)
    assert out2.shape == (batch2, hidden_dim2)
    assert jnp.allclose(out2, ref2, atol=5e-2, rtol=5e-2), \
        float(jnp.max(jnp.abs(out2 - ref2)))

    print("KERNEL_OK")
</pallas_src>

<mosaic_0001>
module attributes {stable_mosaic.version = 11 : i64} {
  func.func @encoder_kernel(%arg0: i32, %arg1: i32, %arg2: memref<16x128xbf16, #tpu.memory_space<vmem>>, %arg3: memref<128x128xbf16, #tpu.memory_space<vmem>>, %arg4: memref<1x128xf32, #tpu.memory_space<vmem>>, %arg5: memref<128x128xbf16, #tpu.memory_space<vmem>>, %arg6: memref<1x128xf32, #tpu.memory_space<vmem>>, %arg7: memref<16x128xf32, #tpu.memory_space<vmem>>, %arg8: memref<16x128xbf16, #tpu.memory_space<vmem>>) attributes {dimension_semantics = [#tpu.dimension_semantics<parallel>, #tpu.dimension_semantics<arbitrary>], iteration_bounds = array<i64: 1, 1>, scalar_prefetch = 0 : i64, scratch_operands = 1 : i64, tpu.core_type = #tpu.core_type<tc>, window_params = [{transform_indices = @transform_0, window_bounds = array<i64: 16, 128>}, {pipeline_mode = #tpu.pipeline_mode<synchronous>, transform_indices = @transform_1, window_bounds = array<i64: 128, 128>}, {pipeline_mode = #tpu.pipeline_mode<synchronous>, transform_indices = @transform_2, window_bounds = array<i64: 1, 128>}, {pipeline_mode = #tpu.pipeline_mode<synchronous>, transform_indices = @transform_3, window_bounds = array<i64: 128, 128>}, {transform_indices = @transform_4, window_bounds = array<i64: 1, 128>}, {transform_indices = @transform_5, window_bounds = array<i64: 16, 128>}]} {
    %c0_i32 = arith.constant 0 : i32
    %0 = arith.cmpi eq, %arg1, %c0_i32 : i32
    %1 = arith.extui %0 : i1 to i32
    %c0_i32_0 = arith.constant 0 : i32
    %2 = arith.cmpi ne, %1, %c0_i32_0 : i32
    scf.if %2 {
      %c0_9 = arith.constant 0 : index
      %c0_10 = arith.constant 0 : index
      %12 = vector.load %arg2[%c0_9, %c0_10] : memref<16x128xbf16, #tpu.memory_space<vmem>>, vector<16x128xbf16>
      %c0_11 = arith.constant 0 : index
      %c0_12 = arith.constant 0 : index
      %13 = vector.load %arg3[%c0_11, %c0_12] : memref<128x128xbf16, #tpu.memory_space<vmem>>, vector<128x128xbf16>
      %cst_13 = arith.constant dense<0.000000e+00> : vector<16x128xf32>
      %14 = tpu.matmul %12, %13, %cst_13 {dimension_numbers = #tpu.dot_dimension_numbers<[1], [0], [0], [1], [0, 0, 1, 1], [], []>} : vector<16x128xbf16>, vector<128x128xbf16>, vector<16x128xf32> -> vector<16x128xf32>
      %c0_14 = arith.constant 0 : index
      %c0_15 = arith.constant 0 : index
      %15 = vector.load %arg4[%c0_14, %c0_15] : memref<1x128xf32, #tpu.memory_space<vmem>>, vector<1x128xf32>
      %16 = vector.broadcast %15 : vector<1x128xf32> to vector<16x128xf32>
      %17 = arith.addf %14, %16 : vector<16x128xf32>
      %cst_16 = arith.constant 0.000000e+00 : f32
      %18 = vector.broadcast %cst_16 : f32 to vector<16x128xf32>
      %19 = arith.maximumf %17, %18 : vector<16x128xf32>
      %20 = arith.truncf %19 : vector<16x128xf32> to vector<16x128xbf16>
      %c0_17 = arith.constant 0 : index
      %c0_18 = arith.constant 0 : index
      %21 = vector.load %arg8[%c0_17, %c0_18] : memref<16x128xbf16, #tpu.memory_space<vmem>>, vector<16x128xbf16>
      tpu.vector_store %arg8[%c0_17, %c0_18], %20 {strides = array<i32>} : memref<16x128xbf16, #tpu.memory_space<vmem>>, vector<16x128xbf16>,
    } else {
    }
    %c0 = arith.constant 0 : index
    %c0_1 = arith.constant 0 : index
    %3 = vector.load %arg8[%c0, %c0_1] : memref<16x128xbf16, #tpu.memory_space<vmem>>, vector<16x128xbf16>
    %c0_2 = arith.constant 0 : index
    %c0_3 = arith.constant 0 : index
    %4 = vector.load %arg5[%c0_2, %c0_3] : memref<128x128xbf16, #tpu.memory_space<vmem>>, vector<128x128xbf16>
    %cst = arith.constant dense<0.000000e+00> : vector<16x128xf32>
    %5 = tpu.matmul %3, %4, %cst {dimension_numbers = #tpu.dot_dimension_numbers<[1], [0], [0], [1], [0, 0, 1, 1], [], []>} : vector<16x128xbf16>, vector<128x128xbf16>, vector<16x128xf32> -> vector<16x128xf32>
    %c0_4 = arith.constant 0 : index
    %c0_5 = arith.constant 0 : index
    %6 = vector.load %arg6[%c0_4, %c0_5] : memref<1x128xf32, #tpu.memory_space<vmem>>, vector<1x128xf32>
    %7 = vector.broadcast %6 : vector<1x128xf32> to vector<16x128xf32>
    %8 = arith.addf %5, %7 : vector<16x128xf32>
    %cst_6 = arith.constant 0.000000e+00 : f32
    %9 = vector.broadcast %cst_6 : f32 to vector<16x128xf32>
    %10 = arith.maximumf %8, %9 : vector<16x128xf32>
    %c0_7 = arith.constant 0 : index
    %c0_8 = arith.constant 0 : index
    %11 = vector.load %arg7[%c0_7, %c0_8] : memref<16x128xf32, #tpu.memory_space<vmem>>, vector<16x128xf32>
    tpu.vector_store %arg7[%c0_7, %c0_8], %10 {strides = array<i32>} : memref<16x128xf32, #tpu.memory_space<vmem>>, vector<16x128xf32>,
    return
  }
  func.func @transform_0(%arg0: i32, %arg1: i32) -> (i32, i32) {
    %c0_i32 = arith.constant 0 : i32
    %c0_i32_0 = arith.constant 0 : i32
    return %arg0, %c0_i32 : i32, i32
  }
  func.func @transform_1(%arg0: i32, %arg1: i32) -> (i32, i32) {
    %c0_i32 = arith.constant 0 : i32
    %c0_i32_0 = arith.constant 0 : i32
    %c0_i32_1 = arith.constant 0 : i32
    return %c0_i32, %c0_i32_0 : i32, i32
  }
  func.func @transform_2(%arg0: i32, %arg1: i32) -> (i32, i32) {
    %c0_i32 = arith.constant 0 : i32
    %c0_i32_0 = arith.constant 0 : i32
    %c0_i32_1 = arith.constant 0 : i32
    return %c0_i32, %c0_i32_0 : i32, i32
  }
  func.func @transform_3(%arg0: i32, %arg1: i32) -> (i32, i32) {
    %c0_i32 = arith.constant 0 : i32
    %c0_i32_0 = arith.constant 0 : i32
    return %c0_i32, %arg1 : i32, i32
  }
  func.func @transform_4(%arg0: i32, %arg1: i32) -> (i32, i32) {
    %c0_i32 = arith.constant 0 : i32
    %c0_i32_0 = arith.constant 0 : i32
    return %c0_i32, %arg1 : i32, i32
  }
  func.func @transform_5(%arg0: i32, %arg1: i32) -> (i32, i32) {
    %c0_i32 = arith.constant 0 : i32
    return %arg0, %arg1 : i32, i32
  }
}

module attributes {stable_mosaic.version = 11 : i64} {
  func.func @encoder_kernel(%arg0: i32, %arg1: i32, %arg2: memref<16x128xbf16, #tpu.memory_space<vmem>>, %arg3: memref<128x128xbf16, #tpu.memory_space<vmem>>, %arg4: memref<1x128xf32, #tpu.memory_space<vmem>>, %arg5: memref<128x128xbf16, #tpu.memory_space<vmem>>, %arg6: memref<1x128xf32, #tpu.memory_space<vmem>>, %arg7: memref<16x128xf32, #tpu.memory_space<vmem>>, %arg8: memref<16x128xbf16, #tpu.memory_space<vmem>>) attributes {dimension_semantics = [#tpu.dimension_semantics<parallel>, #tpu.dimension_semantics<arbitrary>], iteration_bounds = array<i64: 1, 1>, scalar_prefetch = 0 : i64, scratch_operands = 1 : i64, tpu.core_type = #tpu.core_type<tc>, window_params = [{transform_indices = @transform_0, window_bounds = array<i64: 16, 128>}, {pipeline_mode = #tpu.pipeline_mode<synchronous>, transform_indices = @transform_1, window_bounds = array<i64: 128, 128>}, {pipeline_mode = #tpu.pipeline_mode<synchronous>, transform_indices = @transform_2, window_bounds = array<i64: 1, 128>}, {transform_indices = @transform_3, window_bounds = array<i64: 128, 128>}, {transform_indices = @transform_4, window_bounds = array<i64: 1, 128>}, {transform_indices = @transform_5, window_bounds = array<i64: 16, 128>}]} {
    %c0_i32 = arith.constant 0 : i32
    %0 = arith.cmpi eq, %arg1, %c0_i32 : i32
    %1 = arith.extui %0 : i1 to i32
    %c0_i32_0 = arith.constant 0 : i32
    %2 = arith.cmpi ne, %1, %c0_i32_0 : i32
    scf.if %2 {
      %c0_9 = arith.constant 0 : index
      %c0_10 = arith.constant 0 : index
      %12 = vector.load %arg2[%c0_9, %c0_10] : memref<16x128xbf16, #tpu.memory_space<vmem>>, vector<16x128xbf16>
      %c0_11 = arith.constant 0 : index
      %c0_12 = arith.constant 0 : index
      %13 = vector.load %arg3[%c0_11, %c0_12] : memref<128x128xbf16, #tpu.memory_space<vmem>>, vector<128x128xbf16>
      %cst_13 = arith.constant dense<0.000000e+00> : vector<16x128xf32>
      %14 = tpu.matmul %12, %13, %cst_13 {dimension_numbers = #tpu.dot_dimension_numbers<[1], [0], [0], [1], [0, 0, 1, 1], [], []>} : vector<16x128xbf16>, vector<128x128xbf16>, vector<16x128xf32> -> vector<16x128xf32>
      %c0_14 = arith.constant 0 : index
      %c0_15 = arith.constant 0 : index
      %15 = vector.load %arg4[%c0_14, %c0_15] : memref<1x128xf32, #tpu.memory_space<vmem>>, vector<1x128xf32>
      %16 = vector.broadcast %15 : vector<1x128xf32> to vector<16x128xf32>
      %17 = arith.addf %14, %16 : vector<16x128xf32>
      %cst_16 = arith.constant 0.000000e+00 : f32
      %18 = vector.broadcast %cst_16 : f32 to vector<16x128xf32>
      %19 = arith.maximumf %17, %18 : vector<16x128xf32>
      %20 = arith.truncf %19 : vector<16x128xf32> to vector<16x128xbf16>
      %c0_17 = arith.constant 0 : index
      %c0_18 = arith.constant 0 : index
      %21 = vector.load %arg8[%c0_17, %c0_18] : memref<16x128xbf16, #tpu.memory_space<vmem>>, vector<16x128xbf16>
      tpu.vector_store %arg8[%c0_17, %c0_18], %20 {strides = array<i32>} : memref<16x128xbf16, #tpu.memory_space<vmem>>, vector<16x128xbf16>,
    } else {
    }
    %c0 = arith.constant 0 : index
    %c0_1 = arith.constant 0 : index
    %3 = vector.load %arg8[%c0, %c0_1] : memref<16x128xbf16, #tpu.memory_space<vmem>>, vector<16x128xbf16>
    %c0_2 = arith.constant 0 : index
    %c0_3 = arith.constant 0 : index
    %4 = vector.load %arg5[%c0_2, %c0_3] : memref<128x128xbf16, #tpu.memory_space<vmem>>, vector<128x128xbf16>
    %cst = arith.constant dense<0.000000e+00> : vector<16x128xf32>
    %5 = tpu.matmul %3, %4, %cst {dimension_numbers = #tpu.dot_dimension_numbers<[1], [0], [0], [1], [0, 0, 1, 1], [], []>} : vector<16x128xbf16>, vector<128x128xbf16>, vector<16x128xf32> -> vector<16x128xf32>
    %c0_4 = arith.constant 0 : index
    %c0_5 = arith.constant 0 : index
    %6 = vector.load %arg6[%c0_4, %c0_5] : memref<1x128xf32, #tpu.memory_space<vmem>>, vector<1x128xf32>
    %7 = vector.broadcast %6 : vector<1x128xf32> to vector<16x128xf32>
    %8 = arith.addf %5, %7 : vector<16x128xf32>
    %cst_6 = arith.constant 0.000000e+00 : f32
    %9 = vector.broadcast %cst_6 : f32 to vector<16x128xf32>
    %10 = arith.maximumf %8, %9 : vector<16x128xf32>
    %c0_7 = arith.constant 0 : index
    %c0_8 = arith.constant 0 : index
    %11 = vector.load %arg7[%c0_7, %c0_8] : memref<16x128xf32, #tpu.memory_space<vmem>>, vector<16x128xf32>
    tpu.vector_store %arg7[%c0_7, %c0_8], %10 {strides = array<i32>} : memref<16x128xf32, #tpu.memory_space<vmem>>, vector<16x128xf32>,
    return
  }
  func.func @transform_0(%arg0: i32, %arg1: i32) -> (i32, i32) {
    %c0_i32 = arith.constant 0 : i32
    %c0_i32_0 = arith.constant 0 : i32
    return %arg0, %c0_i32 : i32, i32
  }
  func.func @transform_1(%arg0: i32, %arg1: i32) -> (i32, i32) {
    %c0_i32 = arith.constant 0 : i32
    %c0_i32_0 = arith.constant 0 : i32
    %c0_i32_1 = arith.constant 0 : i32
    return %c0_i32, %c0_i32_0 : i32, i32
  }
  func.func @transform_2(%arg0: i32, %arg1: i32) -> (i32, i32) {
    %c0_i32 = arith.constant 0 : i32
    %c0_i32_0 = arith.constant 0 : i32
    %c0_i32_1 = arith.constant 0 : i32
    return %c0_i32, %c0_i32_0 : i32, i32
  }
  func.func @transform_3(%arg0: i32, %arg1: i32) -> (i32, i32) {
    %c0_i32 = arith.constant 0 : i32
    %c0_i32_0 = arith.constant 0 : i32
    return %c0_i32, %arg1 : i32, i32
  }
  func.func @transform_4(%arg0: i32, %arg1: i32) -> (i32, i32) {
    %c0_i32 = arith.constant 0 : i32
    %c0_i32_0 = arith.constant 0 : i32
    return %c0_i32, %arg1 : i32, i32
  }
  func.func @transform_5(%arg0: i32, %arg1: i32) -> (i32, i32) {
    %c0_i32 = arith.constant 0 : i32
    return %arg0, %arg1 : i32, i32
  }
}

</mosaic_0001>

<llo_original>
// kernel: tpu_custom_call.1
$region0: #{tpu_custom_call.1}
  #allocation0 [shape = 'u32[]', space=smem, size = 0x4, offset = 0x4, fixed_abs, tag = 'smem constant byte address 0x4 - core index']
  #allocation1 [shape = 'u32[144,128]{1,0:T(1,128)}', space=vmem, size = 0x12000, scoped, tag = 'internal scratch']
  #allocation2 [shape = 'bf16[16,128]{1,0:T(16,128)(2,1)}', space=vmem, size = 0x1000, scoped, tag = 'scratch operand']
  %s0 = inlined_call_operand.hbm [shape: bf16[16,128], index: 0, kind: input, shape index: {}]
  %s1 = inlined_call_operand.hbm [shape: bf16[128,128], index: 1, kind: input, shape index: {}]
  %s2 = inlined_call_operand.vmem [shape: f32[1,128], index: 2, kind: input, shape index: {}]
  %s3 = inlined_call_operand.hbm [shape: bf16[128,128], index: 3, kind: input, shape index: {}]
  %s4 = inlined_call_operand.vmem [shape: f32[1,128], index: 4, kind: input, shape index: {}]
  %s5 = inlined_call_operand.hbm [shape: f32[16,128], index: 5, kind: output, shape index: {}]
  %s6 = sld [smem:[#allocation0]]
  $region46: #{tpu_custom_call.1} parent=0
    _
  %s8 = ssub.s32 1, %s6
  %s9 = scalar_select 0, %s8, %s6
  $region1: #{tpu_custom_call.1} parent=0
    #allocation3 [shape = 'u8[4096]{0}', space=vmem, size = 0x1000, scoped, tag = 'input window, operand 0, single buffered']
    #allocation4 [shape = 's32[1]{0}', space=sflag, size = 0x4, scoped, tag = 'scoped memory for tpu_custom_call.1']
    #allocation5 [shape = 's32[1]{0}', space=sflag, size = 0x4, scoped, tag = 'scoped memory for tpu_custom_call.1']
    #allocation6 [shape = 'u8[32768]{0}', space=vmem, size = 0x8000, scoped, tag = 'input window, operand 1, single buffered']
    #allocation7 [shape = 's32[1]{0}', space=sflag, size = 0x4, scoped, tag = 'scoped memory for tpu_custom_call.1']
    #allocation8 [shape = 'u8[32768]{0}', space=vmem, size = 0x8000, scoped, tag = 'input window, operand 3, single buffered']
    #allocation9 [shape = 'u8[8192]{0}', space=vmem, size = 0x2000, scoped, tag = 'output window, operand 0, single buffered']
    %10 = vsyncpa [#allocation4], 0
    %11 = vsyncpa [#allocation7], 0
    %12 = vsyncpa [#allocation5], 0
    // Predicated region
    $region2: #{tpu_custom_call.1} parent=1 // pred_check
      _
    $region3: #{tpu_custom_call.1} parent=1 // pred_check_branch
      %14 = sbr.rel (0) target = $region5
    $region4: #{tpu_custom_call.1} parent=1 // pred_region
      %s16 = ssub.s32 128, 128
      %17 = vsyncadd [#allocation4], %s16
      %s18 = sshll.u32 [#allocation3], 4
      %s19 = int_to_ptr.vmem [resolvable:$true] %s18
      %24 = dma.hbm_to_vmem [thread:$0]  %s0, 128, %s19, [#allocation4], 64, 64, 4
    $region5: #{tpu_custom_call.1} parent=1 // pred_fallthru
      _
    // Predicated region
    $region6: #{tpu_custom_call.1} parent=1 // pred_check
      _
    $region7: #{tpu_custom_call.1} parent=1 // pred_check_branch
      %26 = sbr.rel (0) target = $region9
    $region8: #{tpu_custom_call.1} parent=1 // pred_region
      %s28 = ssub.s32 1024, 1024
      %29 = vsyncadd [#allocation7], %s28
      %s30 = sshll.u32 [#allocation6], 4
      %s31 = int_to_ptr.vmem [resolvable:$true] %s30
      %36 = dma.hbm_to_vmem [thread:$0]  %s1, 1024, %s31, [#allocation7], 64, 64, 4
    $region9: #{tpu_custom_call.1} parent=1 // pred_fallthru
      _
    // Predicated region
    $region10: #{tpu_custom_call.1} parent=1 // pred_check
      _
    $region11: #{tpu_custom_call.1} parent=1 // pred_check_branch
      %38 = sbr.rel (0) target = $region13
    $region12: #{tpu_custom_call.1} parent=1 // pred_region
      _
    $region13: #{tpu_custom_call.1} parent=1 // pred_fallthru
      _
    // Predicated region
    $region14: #{tpu_custom_call.1} parent=1 // pred_check
      _
    $region15: #{tpu_custom_call.1} parent=1 // pred_check_branch
      %40 = sbr.rel (0) target = $region17
    $region16: #{tpu_custom_call.1} parent=1 // pred_region
      %s42 = ssub.s32 1024, 1024
      %43 = vsyncadd [#allocation7], %s42
      %s44 = sshll.u32 [#allocation8], 4
      %s45 = int_to_ptr.vmem [resolvable:$true] %s44
      %50 = dma.hbm_to_vmem [thread:$0]  %s3, 1024, %s45, [#allocation7], 64, 64, 4
    $region17: #{tpu_custom_call.1} parent=1 // pred_fallthru
      _
    // Predicated region
    $region18: #{tpu_custom_call.1} parent=1 // pred_check
      _
    $region19: #{tpu_custom_call.1} parent=1 // pred_check_branch
      %52 = sbr.rel (0) target = $region21
    $region20: #{tpu_custom_call.1} parent=1 // pred_region
      _
    $region21: #{tpu_custom_call.1} parent=1 // pred_fallthru
      _
    // Predicated region
    $region22: #{tpu_custom_call.1} parent=1 // pred_check
      _
    $region23: #{tpu_custom_call.1} parent=1 // pred_check_branch
      %54 = sbr.rel (0) target = $region25
    $region24: #{tpu_custom_call.1} parent=1 // pred_region
      %55 = dma.done [#allocation4], 128
    $region25: #{tpu_custom_call.1} parent=1 // pred_fallthru
      _
    // Predicated region
    $region26: #{tpu_custom_call.1} parent=1 // pred_check
      _
    $region27: #{tpu_custom_call.1} parent=1 // pred_check_branch
      %57 = sbr.rel (0) target = $region29
    $region28: #{tpu_custom_call.1} parent=1 // pred_region
      %58 = dma.done [#allocation7], 1024
    $region29: #{tpu_custom_call.1} parent=1 // pred_fallthru
      _
    // Predicated region
    $region30: #{tpu_custom_call.1} parent=1 // pred_check
      _
    $region31: #{tpu_custom_call.1} parent=1 // pred_check_branch
      %60 = sbr.rel (0) target = $region33
    $region32: #{tpu_custom_call.1} parent=1 // pred_region
      %61 = dma.done [#allocation7], 1024
    $region33: #{tpu_custom_call.1} parent=1 // pred_fallthru
      _
    %p63 = scmp.eq.s32.totalorder 0, 0
    // Predicated region
    $region34: #{tpu_custom_call.1} parent=1 // pred_check
      %p64 = pneg %p63
    $region35: #{tpu_custom_call.1} parent=1 // pred_check_branch
      %66 = sbr.rel (%p64) target = $region37
    $region36: #{tpu_custom_call.1} parent=1 // pred_region
      %v67 = vld [vmem:[#allocation3] sm:$0xf]
      %v68 = vld [vmem:[#allocation3 + $0x4] sm:$0xf]
      %v69 = vld [vmem:[#allocation6] sm:$0xf]
      %v70 = vld [vmem:[#allocation6 + $0x4] sm:$0xf]
      %v71 = vld [vmem:[#allocation6 + $0x8] sm:$0xf]
      %v72 = vld [vmem:[#allocation6 + $0xc] sm:$0xf]
      %v73 = vld [vmem:[#allocation6 + $0x10] sm:$0xf]
      %v74 = vld [vmem:[#allocation6 + $0x14] sm:$0xf]
      %v75 = vld [vmem:[#allocation6 + $0x18] sm:$0xf]
      %v76 = vld [vmem:[#allocation6 + $0x1c] sm:$0xf]
      %v77 = vld [vmem:[#allocation6 + $0x20] sm:$0xf]
      %v78 = vld [vmem:[#allocation6 + $0x24] sm:$0xf]
      %v79 = vld [vmem:[#allocation6 + $0x28] sm:$0xf]
      %v80 = vld [vmem:[#allocation6 + $0x2c] sm:$0xf]
      %v81 = vld [vmem:[#allocation6 + $0x30] sm:$0xf]
      %v82 = vld [vmem:[#allocation6 + $0x34] sm:$0xf]
      %v83 = vld [vmem:[#allocation6 + $0x38] sm:$0xf]
      %v84 = vld [vmem:[#allocation6 + $0x3c] sm:$0xf]
      %v85 = vld [vmem:[%s2] sm:$0x1]
      %v87 = vlaneseq
      %v88 = vshrl.u32 %v87, 7
      %v89 = vsub.s32 0, %v88
      %v90 = vrot.slane %v85, %v89
      %v94 = vunpack.c.l.b16 %v67
      %v95 = vunpack.c.l.b16 %v68
      %v96 = vpack.c.b16 %v95, %v94
      %v114 = vunpack.c.l.b16 %v69
      %v115 = vunpack.c.l.b16 %v70
      %v116 = vunpack.c.l.b16 %v71
      %v117 = vunpack.c.l.b16 %v72
      %v118 = vunpack.c.l.b16 %v73
      %v119 = vunpack.c.l.b16 %v74
      %v120 = vunpack.c.l.b16 %v75
      %v121 = vunpack.c.l.b16 %v76
      %v122 = vunpack.c.l.b16 %v77
      %v123 = vunpack.c.l.b16 %v78
      %v124 = vunpack.c.l.b16 %v79
      %v125 = vunpack.c.l.b16 %v80
      %v126 = vunpack.c.l.b16 %v81
      %v127 = vunpack.c.l.b16 %v82
      %v128 = vunpack.c.l.b16 %v83
      %v129 = vunpack.c.l.b16 %v84
      %v130 = vpack.c.b16 %v115, %v114
      %v131 = vpack.c.b16 %v117, %v116
      %v132 = vpack.c.b16 %v119, %v118
      %v133 = vpack.c.b16 %v121, %v120
      %v134 = vpack.c.b16 %v123, %v122
      %v135 = vpack.c.b16 %v125, %v124
      %v136 = vpack.c.b16 %v127, %v126
      %v137 = vpack.c.b16 %v129, %v128
      %146 = vmatprep.subr.bf16.mxu0 0
      %147 = vmatpush1.bf16.msra.mxu0 %v130
      %148 = vmatprep.subr.bf16.mxu0 0
      %149 = vmatpush1.bf16.msra.mxu0 %v131
      %150 = vmatprep.subr.bf16.mxu0 0
      %151 = vmatpush1.bf16.msra.mxu0 %v132
      %152 = vmatprep.subr.bf16.mxu0 0
      %153 = vmatpush1.bf16.msra.mxu0 %v133
      %154 = vmatprep.subr.bf16.mxu0 0
      %155 = vmatpush1.bf16.msra.mxu0 %v134
      %156 = vmatprep.subr.bf16.mxu0 0
      %157 = vmatpush1.bf16.msra.mxu0 %v135
      %158 = vmatprep.subr.bf16.mxu0 0
      %159 = vmatpush1.bf16.msra.mxu0 %v136
      %160 = vmatprep.subr.bf16.mxu0 0
      %161 = vmatpush1.bf16.msra.mxu0 %v137
      %162 = vmatprep.subr.bf16.mxu0 0
      %163 = vmatpush1.bf16.msra.mxu0 0
      %164 = vmatprep.subr.bf16.mxu0 0
      %165 = vmatpush1.bf16.msra.mxu0 0
      %166 = vmatprep.subr.bf16.mxu0 0
      %167 = vmatpush1.bf16.msra.mxu0 0
      %168 = vmatprep.subr.bf16.mxu0 0
      %169 = vmatpush1.bf16.msra.mxu0 0
      %170 = vmatprep.subr.bf16.mxu0 0
      %171 = vmatpush1.bf16.msra.mxu0 0
      %172 = vmatprep.subr.bf16.mxu0 0
      %173 = vmatpush1.bf16.msra.mxu0 0
      %174 = vmatprep.subr.bf16.mxu0 0
      %175 = vmatpush1.bf16.msra.mxu0 0
      %176 = vmatprep.subr.bf16.mxu0 0
      %177 = vmatpush1.bf16.msra.mxu0 0
      %178 = vmatprep.mubr.bf16.mxu0 0
      %179 = vmatmul.mubr.bf16.gmra.mrb[0].mxu0 %v96
      %v180 = vpop.f32.mrb[0].mxu0
      %v181 = vadd.f32 %v90, %v180
      %v182 = vpop.f32.mrb[0].mxu0
      %v183 = vpop.f32.mrb[0].mxu0
      %v184 = vadd.f32 %v90, %v183
      %v185 = vpop.f32.mrb[0].mxu0
      %186 = vdwg.mxu0
      %v187 = vmax.f32 %v181, 0.0
      %v188 = vmax.f32 %v184, 0.0
      %v189 = vpack.c.bf16 %v188, %v187
      %190 = vst [vmem:[#allocation2] sm:$0xff] %v189
    $region37: #{tpu_custom_call.1} parent=1 // pred_fallthru
      _
    %v191 = vld [vmem:[#allocation2] sm:$0xff]
    %v192 = vld [vmem:[#allocation8] sm:$0xf]
    %v193 = vld [vmem:[#allocation8 + $0x4] sm:$0xf]
    %v194 = vld [vmem:[#allocation8 + $0x8] sm:$0xf]
    %v195 = vld [vmem:[#allocation8 + $0xc] sm:$0xf]
    %v196 = vld [vmem:[#allocation8 + $0x10] sm:$0xf]
    %v197 = vld [vmem:[#allocation8 + $0x14] sm:$0xf]
    %v198 = vld [vmem:[#allocation8 + $0x18] sm:$0xf]
    %v199 = vld [vmem:[#allocation8 + $0x1c] sm:$0xf]
    %v200 = vld [vmem:[#allocation8 + $0x20] sm:$0xf]
    %v201 = vld [vmem:[#allocation8 + $0x24] sm:$0xf]
    %v202 = vld [vmem:[#allocation8 + $0x28] sm:$0xf]
    %v203 = vld [vmem:[#allocation8 + $0x2c] sm:$0xf]
    %v204 = vld [vmem:[#allocation8 + $0x30] sm:$0xf]
    %v205 = vld [vmem:[#allocation8 + $0x34] sm:$0xf]
    %v206 = vld [vmem:[#allocation8 + $0x38] sm:$0xf]
    %v207 = vld [vmem:[#allocation8 + $0x3c] sm:$0xf]
    %v208 = vld [vmem:[%s4] sm:$0x1]
    %v210 = vlaneseq
    %v211 = vshrl.u32 %v210, 7
    %v212 = vsub.s32 0, %v211
    %v213 = vrot.slane %v208, %v212
    %v231 = vunpack.c.l.b16 %v192
    %v232 = vunpack.c.l.b16 %v193
    %v233 = vunpack.c.l.b16 %v194
    %v234 = vunpack.c.l.b16 %v195
    %v235 = vunpack.c.l.b16 %v196
    %v236 = vunpack.c.l.b16 %v197
    %v237 = vunpack.c.l.b16 %v198
    %v238 = vunpack.c.l.b16 %v199
    %v239 = vunpack.c.l.b16 %v200
    %v240 = vunpack.c.l.b16 %v201
    %v241 = vunpack.c.l.b16 %v202
    %v242 = vunpack.c.l.b16 %v203
    %v243 = vunpack.c.l.b16 %v204
    %v244 = vunpack.c.l.b16 %v205
    %v245 = vunpack.c.l.b16 %v206
    %v246 = vunpack.c.l.b16 %v207
    %v247 = vpack.c.b16 %v232, %v231
    %v248 = vpack.c.b16 %v234, %v233
    %v249 = vpack.c.b16 %v236, %v235
    %v250 = vpack.c.b16 %v238, %v237
    %v251 = vpack.c.b16 %v240, %v239
    %v252 = vpack.c.b16 %v242, %v241
    %v253 = vpack.c.b16 %v244, %v243
    %v254 = vpack.c.b16 %v246, %v245
    %263 = vmatprep.subr.bf16.mxu0 0
    %264 = vmatpush1.bf16.msra.mxu0 %v247
    %265 = vmatprep.subr.bf16.mxu0 0
    %266 = vmatpush1.bf16.msra.mxu0 %v248
    %267 = vmatprep.subr.bf16.mxu0 0
    %268 = vmatpush1.bf16.msra.mxu0 %v249
    %269 = vmatprep.subr.bf16.mxu0 0
    %270 = vmatpush1.bf16.msra.mxu0 %v250
    %271 = vmatprep.subr.bf16.mxu0 0
    %272 = vmatpush1.bf16.msra.mxu0 %v251
    %273 = vmatprep.subr.bf16.mxu0 0
    %274 = vmatpush1.bf16.msra.mxu0 %v252
    %275 = vmatprep.subr.bf16.mxu0 0
    %276 = vmatpush1.bf16.msra.mxu0 %v253
    %277 = vmatprep.subr.bf16.mxu0 0
    %278 = vmatpush1.bf16.msra.mxu0 %v254
    %279 = vmatprep.subr.bf16.mxu0 0
    %280 = vmatpush1.bf16.msra.mxu0 0
    %281 = vmatprep.subr.bf16.mxu0 0
    %282 = vmatpush1.bf16.msra.mxu0 0
    %283 = vmatprep.subr.bf16.mxu0 0
    %284 = vmatpush1.bf16.msra.mxu0 0
    %285 = vmatprep.subr.bf16.mxu0 0
    %286 = vmatpush1.bf16.msra.mxu0 0
    %287 = vmatprep.subr.bf16.mxu0 0
    %288 = vmatpush1.bf16.msra.mxu0 0
    %289 = vmatprep.subr.bf16.mxu0 0
    %290 = vmatpush1.bf16.msra.mxu0 0
    %291 = vmatprep.subr.bf16.mxu0 0
    %292 = vmatpush1.bf16.msra.mxu0 0
    %293 = vmatprep.subr.bf16.mxu0 0
    %294 = vmatpush1.bf16.msra.mxu0 0
    %295 = vmatprep.mubr.bf16.mxu0 0
    %296 = vmatmul.mubr.bf16.gmra.mrb[0].mxu0 %v191
    %v297 = vpop.f32.mrb[0].mxu0
    %v298 = vadd.f32 %v213, %v297
    %v299 = vpop.f32.mrb[0].mxu0
    %v300 = vpop.f32.mrb[0].mxu0
    %v301 = vadd.f32 %v213, %v300
    %v302 = vpop.f32.mrb[0].mxu0
    %303 = vdwg.mxu0
    %v304 = vmax.f32 %v298, 0.0
    %v305 = vmax.f32 %v301, 0.0
    %306 = vst [vmem:[#allocation9] sm:$0xff] %v304
    %307 = vst [vmem:[#allocation9 + $0x8] sm:$0xff] %v305
    // Predicated region
    $region38: #{tpu_custom_call.1} parent=1 // pred_check
      _
    $region39: #{tpu_custom_call.1} parent=1 // pred_check_branch
      %309 = sbr.rel (0) target = $region41
    $region40: #{tpu_custom_call.1} parent=1 // pred_region
      %s311 = ssub.s32 256, 256
      %312 = vsyncadd [#allocation5], %s311
      %s313 = sshll.u32 [#allocation9], 4
      %s314 = int_to_ptr.vmem [resolvable:$true] %s313
      %319 = dma.vmem_to_hbm [thread:$0]  %s314, 256, %s5, [#allocation5], 128, 128, 8
    $region41: #{tpu_custom_call.1} parent=1 // pred_fallthru
      _
    // Predicated region
    $region42: #{tpu_custom_call.1} parent=1 // pred_check
      _
    $region43: #{tpu_custom_call.1} parent=1 // pred_check_branch
      %321 = sbr.rel (0) target = $region45
    $region44: #{tpu_custom_call.1} parent=1 // pred_region
      %322 = dma.done [#allocation5], 256
    $region45: #{tpu_custom_call.1} parent=1 // pred_fallthru
      _
    %323 = vsyncpa [#allocation4], 1
    %324 = vsyncpa [#allocation7], 1
    %325 = vsyncpa [#allocation5], 1

// kernel: tpu_custom_call.1
$region0: #{tpu_custom_call.1}
  #allocation0 [shape = 'u32[]', space=smem, size = 0x4, offset = 0x4, fixed_abs, tag = 'smem constant byte address 0x4 - core index']
  #allocation1 [shape = 'u32[144,128]{1,0:T(1,128)}', space=vmem, size = 0x12000, scoped, tag = 'internal scratch']
  #allocation2 [shape = 'bf16[16,128]{1,0:T(16,128)(2,1)}', space=vmem, size = 0x1000, scoped, tag = 'scratch operand']
  %s0 = inlined_call_operand.hbm [shape: bf16[16,128], index: 0, kind: input, shape index: {}]
  %s1 = inlined_call_operand.hbm [shape: bf16[128,128], index: 1, kind: input, shape index: {}]
  %s2 = inlined_call_operand.vmem [shape: f32[1,128], index: 2, kind: input, shape index: {}]
  %s3 = inlined_call_operand.hbm [shape: bf16[128,128], index: 3, kind: input, shape index: {}]
  %s4 = inlined_call_operand.vmem [shape: f32[1,128], index: 4, kind: input, shape index: {}]
  %s5 = inlined_call_operand.hbm [shape: f32[16,128], index: 5, kind: output, shape index: {}]
  %s6 = sld [smem:[#allocation0]]
  $region46: #{tpu_custom_call.1} parent=0
    _
  %s8 = ssub.s32 1, %s6
  %s9 = scalar_select 0, %s8, %s6
  $region1: #{tpu_custom_call.1} parent=0
    #allocation3 [shape = 'u8[4096]{0}', space=vmem, size = 0x1000, scoped, tag = 'input window, operand 0, single buffered']
    #allocation4 [shape = 's32[1]{0}', space=sflag, size = 0x4, scoped, tag = 'scoped memory for tpu_custom_call.1']
    #allocation5 [shape = 's32[1]{0}', space=sflag, size = 0x4, scoped, tag = 'scoped memory for tpu_custom_call.1']
    #allocation6 [shape = 'u8[32768]{0}', space=vmem, size = 0x8000, scoped, tag = 'input window, operand 1, single buffered']
    #allocation7 [shape = 's32[1]{0}', space=sflag, size = 0x4, scoped, tag = 'scoped memory for tpu_custom_call.1']
    #allocation8 [shape = 'u8[32768]{0}', space=vmem, size = 0x8000, scoped, tag = 'input window, operand 3, single buffered']
    #allocation9 [shape = 'u8[8192]{0}', space=vmem, size = 0x2000, scoped, tag = 'output window, operand 0, single buffered']
    %10 = vsyncpa [#allocation4], 0
    %11 = vsyncpa [#allocation7], 0
    %12 = vsyncpa [#allocation5], 0
    // Predicated region
    $region2: #{tpu_custom_call.1} parent=1 // pred_check
      _
    $region3: #{tpu_custom_call.1} parent=1 // pred_check_branch
      %14 = sbr.rel (0) target = $region5
    $region4: #{tpu_custom_call.1} parent=1 // pred_region
      %s16 = ssub.s32 128, 128
      %17 = vsyncadd [#allocation4], %s16
      %s18 = sshll.u32 [#allocation3], 4
      %s19 = int_to_ptr.vmem [resolvable:$true] %s18
      %24 = dma.hbm_to_vmem [thread:$0]  %s0, 128, %s19, [#allocation4], 64, 64, 4
    $region5: #{tpu_custom_call.1} parent=1 // pred_fallthru
      _
    // Predicated region
    $region6: #{tpu_custom_call.1} parent=1 // pred_check
      _
    $region7: #{tpu_custom_call.1} parent=1 // pred_check_branch
      %26 = sbr.rel (0) target = $region9
    $region8: #{tpu_custom_call.1} parent=1 // pred_region
      %s28 = ssub.s32 1024, 1024
      %29 = vsyncadd [#allocation7], %s28
      %s30 = sshll.u32 [#allocation6], 4
      %s31 = int_to_ptr.vmem [resolvable:$true] %s30
      %36 = dma.hbm_to_vmem [thread:$0]  %s1, 1024, %s31, [#allocation7], 64, 64, 4
    $region9: #{tpu_custom_call.1} parent=1 // pred_fallthru
      _
    // Predicated region
    $region10: #{tpu_custom_call.1} parent=1 // pred_check
      _
    $region11: #{tpu_custom_call.1} parent=1 // pred_check_branch
      %38 = sbr.rel (0) target = $region13
    $region12: #{tpu_custom_call.1} parent=1 // pred_region
      _
    $region13: #{tpu_custom_call.1} parent=1 // pred_fallthru
      _
    // Predicated region
    $region14: #{tpu_custom_call.1} parent=1 // pred_check
      _
    $region15: #{tpu_custom_call.1} parent=1 // pred_check_branch
      %40 = sbr.rel (0) target = $region17
    $region16: #{tpu_custom_call.1} parent=1 // pred_region
      %s42 = ssub.s32 1024, 1024
      %43 = vsyncadd [#allocation7], %s42
      %s44 = sshll.u32 [#allocation8], 4
      %s45 = int_to_ptr.vmem [resolvable:$true] %s44
      %50 = dma.hbm_to_vmem [thread:$0]  %s3, 1024, %s45, [#allocation7], 64, 64, 4
    $region17: #{tpu_custom_call.1} parent=1 // pred_fallthru
      _
    // Predicated region
    $region18: #{tpu_custom_call.1} parent=1 // pred_check
      _
    $region19: #{tpu_custom_call.1} parent=1 // pred_check_branch
      %52 = sbr.rel (0) target = $region21
    $region20: #{tpu_custom_call.1} parent=1 // pred_region
      _
    $region21: #{tpu_custom_call.1} parent=1 // pred_fallthru
      _
    // Predicated region
    $region22: #{tpu_custom_call.1} parent=1 // pred_check
      _
    $region23: #{tpu_custom_call.1} parent=1 // pred_check_branch
      %54 = sbr.rel (0) target = $region25
    $region24: #{tpu_custom_call.1} parent=1 // pred_region
      %55 = dma.done [#allocation4], 128
    $region25: #{tpu_custom_call.1} parent=1 // pred_fallthru
      _
    // Predicated region
    $region26: #{tpu_custom_call.1} parent=1 // pred_check
      _
    $region27: #{tpu_custom_call.1} parent=1 // pred_check_branch
      %57 = sbr.rel (0) target = $region29
    $region28: #{tpu_custom_call.1} parent=1 // pred_region
      %58 = dma.done [#allocation7], 1024
    $region29: #{tpu_custom_call.1} parent=1 // pred_fallthru
      _
    // Predicated region
    $region30: #{tpu_custom_call.1} parent=1 // pred_check
      _
    $region31: #{tpu_custom_call.1} parent=1 // pred_check_branch
      %60 = sbr.rel (0) target = $region33
    $region32: #{tpu_custom_call.1} parent=1 // pred_region
      %61 = dma.done [#allocation7], 1024
    $region33: #{tpu_custom_call.1} parent=1 // pred_fallthru
      _
    %p63 = scmp.eq.s32.totalorder 0, 0
    // Predicated region
    $region34: #{tpu_custom_call.1} parent=1 // pred_check
      %p64 = pneg %p63
    $region35: #{tpu_custom_call.1} parent=1 // pred_check_branch
      %66 = sbr.rel (%p64) target = $region37
    $region36: #{tpu_custom_call.1} parent=1 // pred_region
      %v67 = vld [vmem:[#allocation3] sm:$0xf]
      %v68 = vld [vmem:[#allocation3 + $0x4] sm:$0xf]
      %v69 = vld [vmem:[#allocation6] sm:$0xf]
      %v70 = vld [vmem:[#allocation6 + $0x4] sm:$0xf]
      %v71 = vld [vmem:[#allocation6 + $0x8] sm:$0xf]
      %v72 = vld [vmem:[#allocation6 + $0xc] sm:$0xf]
      %v73 = vld [vmem:[#allocation6 + $0x10] sm:$0xf]
      %v74 = vld [vmem:[#allocation6 + $0x14] sm:$0xf]
      %v75 = vld [vmem:[#allocation6 + $0x18] sm:$0xf]
      %v76 = vld [vmem:[#allocation6 + $0x1c] sm:$0xf]
      %v77 = vld [vmem:[#allocation6 + $0x20] sm:$0xf]
      %v78 = vld [vmem:[#allocation6 + $0x24] sm:$0xf]
      %v79 = vld [vmem:[#allocation6 + $0x28] sm:$0xf]
      %v80 = vld [vmem:[#allocation6 + $0x2c] sm:$0xf]
      %v81 = vld [vmem:[#allocation6 + $0x30] sm:$0xf]
      %v82 = vld [vmem:[#allocation6 + $0x34] sm:$0xf]
      %v83 = vld [vmem:[#allocation6 + $0x38] sm:$0xf]
      %v84 = vld [vmem:[#allocation6 + $0x3c] sm:$0xf]
      %v85 = vld [vmem:[%s2] sm:$0x1]
      %v87 = vlaneseq
      %v88 = vshrl.u32 %v87, 7
      %v89 = vsub.s32 0, %v88
      %v90 = vrot.slane %v85, %v89
      %v94 = vunpack.c.l.b16 %v67
      %v95 = vunpack.c.l.b16 %v68
      %v96 = vpack.c.b16 %v95, %v94
      %v114 = vunpack.c.l.b16 %v69
      %v115 = vunpack.c.l.b16 %v70
      %v116 = vunpack.c.l.b16 %v71
      %v117 = vunpack.c.l.b16 %v72
      %v118 = vunpack.c.l.b16 %v73
      %v119 = vunpack.c.l.b16 %v74
      %v120 = vunpack.c.l.b16 %v75
      %v121 = vunpack.c.l.b16 %v76
      %v122 = vunpack.c.l.b16 %v77
      %v123 = vunpack.c.l.b16 %v78
      %v124 = vunpack.c.l.b16 %v79
      %v125 = vunpack.c.l.b16 %v80
      %v126 = vunpack.c.l.b16 %v81
      %v127 = vunpack.c.l.b16 %v82
      %v128 = vunpack.c.l.b16 %v83
      %v129 = vunpack.c.l.b16 %v84
      %v130 = vpack.c.b16 %v115, %v114
      %v131 = vpack.c.b16 %v117, %v116
      %v132 = vpack.c.b16 %v119, %v118
      %v133 = vpack.c.b16 %v121, %v120
      %v134 = vpack.c.b16 %v123, %v122
      %v135 = vpack.c.b16 %v125, %v124
      %v136 = vpack.c.b16 %v127, %v126
      %v137 = vpack.c.b16 %v129, %v128
      %146 = vmatprep.subr.bf16.mxu0 0
      %147 = vmatpush1.bf16.msra.mxu0 %v130
      %148 = vmatprep.subr.bf16.mxu0 0
      %149 = vmatpush1.bf16.msra.mxu0 %v131
      %150 = vmatprep.subr.bf16.mxu0 0
      %151 = vmatpush1.bf16.msra.mxu0 %v132
      %152 = vmatprep.subr.bf16.mxu0 0
      %153 = vmatpush1.bf16.msra.mxu0 %v133
      %154 = vmatprep.subr.bf16.mxu0 0
      %155 = vmatpush1.bf16.msra.mxu0 %v134
      %156 = vmatprep.subr.bf16.mxu0 0
      %157 = vmatpush1.bf16.msra.mxu0 %v135
      %158 = vmatprep.subr.bf16.mxu0 0
      %159 = vmatpush1.bf16.msra.mxu0 %v136
      %160 = vmatprep.subr.bf16.mxu0 0
      %161 = vmatpush1.bf16.msra.mxu0 %v137
      %162 = vmatprep.subr.bf16.mxu0 0
      %163 = vmatpush1.bf16.msra.mxu0 0
      %164 = vmatprep.subr.bf16.mxu0 0
      %165 = vmatpush1.bf16.msra.mxu0 0
      %166 = vmatprep.subr.bf16.mxu0 0
      %167 = vmatpush1.bf16.msra.mxu0 0
      %168 = vmatprep.subr.bf16.mxu0 0
      %169 = vmatpush1.bf16.msra.mxu0 0
      %170 = vmatprep.subr.bf16.mxu0 0
      %171 = vmatpush1.bf16.msra.mxu0 0
      %172 = vmatprep.subr.bf16.mxu0 0
      %173 = vmatpush1.bf16.msra.mxu0 0
      %174 = vmatprep.subr.bf16.mxu0 0
      %175 = vmatpush1.bf16.msra.mxu0 0
      %176 = vmatprep.subr.bf16.mxu0 0
      %177 = vmatpush1.bf16.msra.mxu0 0
      %178 = vmatprep.mubr.bf16.mxu0 0
      %179 = vmatmul.mubr.bf16.gmra.mrb[0].mxu0 %v96
      %v180 = vpop.f32.mrb[0].mxu0
      %v181 = vadd.f32 %v90, %v180
      %v182 = vpop.f32.mrb[0].mxu0
      %v183 = vpop.f32.mrb[0].mxu0
      %v184 = vadd.f32 %v90, %v183
      %v185 = vpop.f32.mrb[0].mxu0
      %186 = vdwg.mxu0
      %v187 = vmax.f32 %v181, 0.0
      %v188 = vmax.f32 %v184, 0.0
      %v189 = vpack.c.bf16 %v188, %v187
      %190 = vst [vmem:[#allocation2] sm:$0xff] %v189
    $region37: #{tpu_custom_call.1} parent=1 // pred_fallthru
      _
    %v191 = vld [vmem:[#allocation2] sm:$0xff]
    %v192 = vld [vmem:[#allocation8] sm:$0xf]
    %v193 = vld [vmem:[#allocation8 + $0x4] sm:$0xf]
    %v194 = vld [vmem:[#allocation8 + $0x8] sm:$0xf]
    %v195 = vld [vmem:[#allocation8 + $0xc] sm:$0xf]
    %v196 = vld [vmem:[#allocation8 + $0x10] sm:$0xf]
    %v197 = vld [vmem:[#allocation8 + $0x14] sm:$0xf]
    %v198 = vld [vmem:[#allocation8 + $0x18] sm:$0xf]
    %v199 = vld [vmem:[#allocation8 + $0x1c] sm:$0xf]
    %v200 = vld [vmem:[#allocation8 + $0x20] sm:$0xf]
    %v201 = vld [vmem:[#allocation8 + $0x24] sm:$0xf]
    %v202 = vld [vmem:[#allocation8 + $0x28] sm:$0xf]
    %v203 = vld [vmem:[#allocation8 + $0x2c] sm:$0xf]
    %v204 = vld [vmem:[#allocation8 + $0x30] sm:$0xf]
    %v205 = vld [vmem:[#allocation8 + $0x34] sm:$0xf]
    %v206 = vld [vmem:[#allocation8 + $0x38] sm:$0xf]
    %v207 = vld [vmem:[#allocation8 + $0x3c] sm:$0xf]
    %v208 = vld [vmem:[%s4] sm:$0x1]
    %v210 = vlaneseq
    %v211 = vshrl.u32 %v210, 7
    %v212 = vsub.s32 0, %v211
    %v213 = vrot.slane %v208, %v212
    %v231 = vunpack.c.l.b16 %v192
    %v232 = vunpack.c.l.b16 %v193
    %v233 = vunpack.c.l.b16 %v194
    %v234 = vunpack.c.l.b16 %v195
    %v235 = vunpack.c.l.b16 %v196
    %v236 = vunpack.c.l.b16 %v197
    %v237 = vunpack.c.l.b16 %v198
    %v238 = vunpack.c.l.b16 %v199
    %v239 = vunpack.c.l.b16 %v200
    %v240 = vunpack.c.l.b16 %v201
    %v241 = vunpack.c.l.b16 %v202
    %v242 = vunpack.c.l.b16 %v203
    %v243 = vunpack.c.l.b16 %v204
    %v244 = vunpack.c.l.b16 %v205
    %v245 = vunpack.c.l.b16 %v206
    %v246 = vunpack.c.l.b16 %v207
    %v247 = vpack.c.b16 %v232, %v231
    %v248 = vpack.c.b16 %v234, %v233
    %v249 = vpack.c.b16 %v236, %v235
    %v250 = vpack.c.b16 %v238, %v237
    %v251 = vpack.c.b16 %v240, %v239
    %v252 = vpack.c.b16 %v242, %v241
    %v253 = vpack.c.b16 %v244, %v243
    %v254 = vpack.c.b16 %v246, %v245
    %263 = vmatprep.subr.bf16.mxu0 0
    %264 = vmatpush1.bf16.msra.mxu0 %v247
    %265 = vmatprep.subr.bf16.mxu0 0
    %266 = vmatpush1.bf16.msra.mxu0 %v248
    %267 = vmatprep.subr.bf16.mxu0 0
    %268 = vmatpush1.bf16.msra.mxu0 %v249
    %269 = vmatprep.subr.bf16.mxu0 0
    %270 = vmatpush1.bf16.msra.mxu0 %v250
    %271 = vmatprep.subr.bf16.mxu0 0
    %272 = vmatpush1.bf16.msra.mxu0 %v251
    %273 = vmatprep.subr.bf16.mxu0 0
    %274 = vmatpush1.bf16.msra.mxu0 %v252
    %275 = vmatprep.subr.bf16.mxu0 0
    %276 = vmatpush1.bf16.msra.mxu0 %v253
    %277 = vmatprep.subr.bf16.mxu0 0
    %278 = vmatpush1.bf16.msra.mxu0 %v254
    %279 = vmatprep.subr.bf16.mxu0 0
    %280 = vmatpush1.bf16.msra.mxu0 0
    %281 = vmatprep.subr.bf16.mxu0 0
    %282 = vmatpush1.bf16.msra.mxu0 0
    %283 = vmatprep.subr.bf16.mxu0 0
    %284 = vmatpush1.bf16.msra.mxu0 0
    %285 = vmatprep.subr.bf16.mxu0 0
    %286 = vmatpush1.bf16.msra.mxu0 0
    %287 = vmatprep.subr.bf16.mxu0 0
    %288 = vmatpush1.bf16.msra.mxu0 0
    %289 = vmatprep.subr.bf16.mxu0 0
    %290 = vmatpush1.bf16.msra.mxu0 0
    %291 = vmatprep.subr.bf16.mxu0 0
    %292 = vmatpush1.bf16.msra.mxu0 0
    %293 = vmatprep.subr.bf16.mxu0 0
    %294 = vmatpush1.bf16.msra.mxu0 0
    %295 = vmatprep.mubr.bf16.mxu0 0
    %296 = vmatmul.mubr.bf16.gmra.mrb[0].mxu0 %v191
    %v297 = vpop.f32.mrb[0].mxu0
    %v298 = vadd.f32 %v213, %v297
    %v299 = vpop.f32.mrb[0].mxu0
    %v300 = vpop.f32.mrb[0].mxu0
    %v301 = vadd.f32 %v213, %v300
    %v302 = vpop.f32.mrb[0].mxu0
    %303 = vdwg.mxu0
    %v304 = vmax.f32 %v298, 0.0
    %v305 = vmax.f32 %v301, 0.0
    %306 = vst [vmem:[#allocation9] sm:$0xff] %v304
    %307 = vst [vmem:[#allocation9 + $0x8] sm:$0xff] %v305
    // Predicated region
    $region38: #{tpu_custom_call.1} parent=1 // pred_check
      _
    $region39: #{tpu_custom_call.1} parent=1 // pred_check_branch
      %309 = sbr.rel (0) target = $region41
    $region40: #{tpu_custom_call.1} parent=1 // pred_region
      %s311 = ssub.s32 256, 256
      %312 = vsyncadd [#allocation5], %s311
      %s313 = sshll.u32 [#allocation9], 4
      %s314 = int_to_ptr.vmem [resolvable:$true] %s313
      %319 = dma.vmem_to_hbm [thread:$0]  %s314, 256, %s5, [#allocation5], 128, 128, 8
    $region41: #{tpu_custom_call.1} parent=1 // pred_fallthru
      _
    // Predicated region
    $region42: #{tpu_custom_call.1} parent=1 // pred_check
      _
    $region43: #{tpu_custom_call.1} parent=1 // pred_check_branch
      %321 = sbr.rel (0) target = $region45
    $region44: #{tpu_custom_call.1} parent=1 // pred_region
      %322 = dma.done [#allocation5], 256
    $region45: #{tpu_custom_call.1} parent=1 // pred_fallthru
      _
    %323 = vsyncpa [#allocation4], 1
    %324 = vsyncpa [#allocation7], 1
    %325 = vsyncpa [#allocation5], 1

</llo_original>
